<compile_context>
chip_gen: v7x
topology: tpu7x:2x2x1
jax: 0.10.0
libtpu: 0.0.40
codegen_flags: <defaults>
</compile_context>

<pallas_src>
import functools

import jax
import jax.numpy as jnp
from jax import lax
from jax.experimental import pallas as pl
from jax.experimental.pallas import tpu as pltpu


def _dgi_kernel(xf_ref, adj_ref, w_ref, b_ref, pw_ref, wbil_ref, bbil_ref,
                out_ref):
    """One grid step processes TB batch elements.

    xf_ref   : (TB, N, 2F)  [x1 | x2] concatenated along features
    adj_ref  : (TB, N, N)
    w_ref    : (F, H)       GCN weight
    b_ref    : (1, H)       GCN bias
    pw_ref   : (1, 1) SMEM  PReLU slope (scalar)
    wbil_ref : (H, H)       bilinear weight
    bbil_ref : (1, 1) SMEM  bilinear bias (scalar)
    out_ref  : (TB, 1, 2N)  [f(h1,s) | f(h2,s)] along the last (lane) axis
    """
    xf = xf_ref[...]
    adj = adj_ref[...]
    w = w_ref[...]
    bias = b_ref[...]
    w_bil = wbil_ref[...]
    slope = pw_ref[0, 0]
    b_bil = bbil_ref[0, 0]

    TB, N, F2 = xf.shape
    F = F2 // 2
    H = w.shape[1]

    if F <= H:
        # Cheaper order: (adj @ [x1|x2]) @ W — one fused adj matmul, 2F lanes.
        axf = jnp.einsum('bnm,bmf->bnf', adj, xf,
                         preferred_element_type=jnp.float32)           # (TB,N,2F)
        ax = jnp.concatenate([axf[..., :F], axf[..., F:]], axis=1)     # (TB,2N,F)
        z = jnp.dot(ax.reshape(TB * 2 * N, F), w,
                    preferred_element_type=jnp.float32)                # (TB*2N,H)
        z = z.reshape(TB, 2 * N, H)
    else:
        # H < F: do x @ W first, then one fused adj matmul over 2H lanes.
        x2d = xf.reshape(TB * N, 2 * F)
        xw = jnp.concatenate(
            [jnp.dot(x2d[:, :F], w, preferred_element_type=jnp.float32),
             jnp.dot(x2d[:, F:], w, preferred_element_type=jnp.float32)],
            axis=-1).reshape(TB, N, 2 * H)                             # (TB,N,2H)
        zf = jnp.einsum('bnm,bmh->bnh', adj, xw,
                        preferred_element_type=jnp.float32)            # (TB,N,2H)
        z = jnp.concatenate([zf[..., :H], zf[..., H:]], axis=1)        # (TB,2N,H)

    z = z + bias[None]                       # GCN bias
    h = jnp.where(z > 0, z, slope * z)       # single fused PReLU; h = [h1 ; h2]

    # Readout + sigmoid: summary vector per batch element from h1 only.
    s = jax.nn.sigmoid(jnp.mean(h[:, :N, :], axis=1))                  # (TB, H)

    # Bilinear discriminator: score[b,n] = h[b,n,:] @ W_bil @ s[b,:] + bias.
    # t[b,k] = sum_j W_bil[k,j] * s[b,j]  (rhs-transposed matmul, no XLU .T)
    t = lax.dot_general(s, w_bil, (((1,), (1,)), ((), ())),
                        preferred_element_type=jnp.float32)            # (TB, H)
    sc = jnp.sum(h * t[:, None, :], axis=-1) + b_bil                   # (TB, 2N)

    out_ref[:, 0, :] = sc                                              # lane-dense


def _pick_batch_tile(B, max_tb=8):
    tb = min(B, max_tb)
    while B % tb:
        tb -= 1
    return max(tb, 1)


def _vmem_limit_bytes(TB, N, F, H):
    f32 = 4
    io_blocks = TB * (N * 2 * F + N * N + 2 * N) * f32    # xf + adj + out per step
    weights = (F * H + H + H * H) * f32
    scratch = TB * 2 * N * (max(2 * F, 2 * H) + H) * f32  # intermediates (rough)
    est = 2 * io_blocks + weights + 2 * scratch           # x2: double buffering
    mib = 1024 * 1024
    # Raise the scoped-VMEM ceiling above the 16/32 MiB defaults but stay
    # within v7x's 64 MiB physical VMEM.
    return int(min(max(est, 32 * mib), 64 * mib))


@functools.partial(jax.jit, static_argnames=("batch_tile",))
def dgi_forward(x1, x2, adj, w, b, prelu_w, w_bil, b_bil, *, batch_tile=None):
    B, N, F = x1.shape
    H = w.shape[1]
    TB = batch_tile if batch_tile is not None else _pick_batch_tile(B)
    assert B % TB == 0, (B, TB)

    # Fuse the two GCN branches: one adjacency matmul over [x1 | x2].
    xf = jnp.concatenate([x1, x2], axis=-1).astype(jnp.float32)        # (B, N, 2F)
    prelu_s = prelu_w.reshape(1, 1).astype(jnp.float32)
    bbil_s = b_bil.reshape(1, 1).astype(jnp.float32)

    grid_spec = pltpu.PrefetchScalarGridSpec(
        num_scalar_prefetch=0,
        grid=(B // TB,),
        in_specs=[
            pl.BlockSpec((TB, N, 2 * F), lambda i: (i, 0, 0)),   # [x1|x2]
            pl.BlockSpec((TB, N, N), lambda i: (i, 0, 0)),       # adj
            pl.BlockSpec((F, H), lambda i: (0, 0)),              # GCN weight
            pl.BlockSpec((1, H), lambda i: (0, 0)),              # GCN bias
            pl.BlockSpec(memory_space=pltpu.MemorySpace.SMEM),   # PReLU slope
            pl.BlockSpec((H, H), lambda i: (0, 0)),              # bilinear weight
            pl.BlockSpec(memory_space=pltpu.MemorySpace.SMEM),   # bilinear bias
        ],
        out_specs=pl.BlockSpec((TB, 1, 2 * N), lambda i: (i, 0, 0)),
    )

    out = pl.pallas_call(
        _dgi_kernel,
        out_shape=jax.ShapeDtypeStruct((B, 1, 2 * N), jnp.float32),
        grid_spec=grid_spec,
        compiler_params=pltpu.CompilerParams(
            dimension_semantics=("parallel",),
            vmem_limit_bytes=_vmem_limit_bytes(TB, N, F, H),
        ),
    )(xf, adj, w, b, prelu_s, w_bil, bbil_s)

    # cat((f(h1,s), f(h2,s)), dim=1) -> (B, 2N)
    return out.reshape(B, 2 * N)


def _reference(x1, x2, adj, w, b, prelu_w, w_bil, b_bil):
    # Pure-JAX reference for verification (mirrors the PyTorch module).
    def gcn(x):
        h = jnp.einsum('bnm,bmh->bnh', adj,
                       jnp.einsum('bnf,fh->bnh', x, w)) + b
        return jnp.where(h > 0, h, prelu_w.reshape(()) * h)

    h1 = gcn(x1)
    h2 = gcn(x2)
    s = jax.nn.sigmoid(jnp.mean(h1, axis=1))                  # (B, H)
    t = jnp.einsum('ij,bj->bi', w_bil, s)                     # (B, H)
    sc1 = jnp.einsum('bnh,bh->bn', h1, t) + b_bil.reshape(())
    sc2 = jnp.einsum('bnh,bh->bn', h2, t) + b_bil.reshape(())
    return jnp.concatenate([sc1, sc2], axis=1)


if __name__ == "__main__":
    B, N, F, H = 2, 16, 8, 32

    key = jax.random.PRNGKey(0)
    k1, k2, k3, k4, k5 = jax.random.split(key, 5)

    x1 = jax.random.normal(k1, (B, N, F), dtype=jnp.float32)
    x2 = jax.random.normal(k2, (B, N, F), dtype=jnp.float32)
    # Symmetric, row-normalized dense adjacency with self loops.
    a = jax.random.uniform(k3, (B, N, N), dtype=jnp.float32)
    adj = (a + jnp.transpose(a, (0, 2, 1))) * 0.5 + jnp.eye(N, dtype=jnp.float32)
    adj = adj / jnp.sum(adj, axis=-1, keepdims=True)

    # Deterministic parameter init (synthetic; matches module shapes).
    w = jax.random.normal(k4, (F, H), dtype=jnp.float32) * (1.0 / jnp.sqrt(F))
    b = jnp.zeros((1, H), dtype=jnp.float32)                 # GCN bias
    prelu_w = jnp.full((1, 1), 0.25, dtype=jnp.float32)      # PReLU default
    w_bil = jax.random.normal(k5, (H, H), dtype=jnp.float32) * (1.0 / jnp.sqrt(H))
    b_bil = jnp.zeros((1, 1), dtype=jnp.float32)             # bilinear bias

    score = dgi_forward(x1, x2, adj, w, b, prelu_w, w_bil, b_bil)
    score = jax.block_until_ready(score)

    ref = _reference(x1, x2, adj, w, b, prelu_w, w_bil, b_bil)
    assert score.shape == (B, 2 * N), score.shape
    assert jnp.allclose(score, ref, atol=5e-4, rtol=5e-4), (
        float(jnp.max(jnp.abs(score - ref))))

    print("KERNEL_OK")
</pallas_src>

<mosaic_0001>
module attributes {stable_mosaic.version = 11 : i64} {
  func.func @_dgi_kernel(%arg0: i32, %arg1: memref<2x16x16xf32, #tpu.memory_space<vmem>>, %arg2: memref<2x16x16xf32, #tpu.memory_space<vmem>>, %arg3: memref<8x32xf32, #tpu.memory_space<vmem>>, %arg4: memref<1x32xf32, #tpu.memory_space<vmem>>, %arg5: memref<1x1xf32, #tpu.memory_space<smem>>, %arg6: memref<32x32xf32, #tpu.memory_space<vmem>>, %arg7: memref<1x1xf32, #tpu.memory_space<smem>>, %arg8: memref<2x1x32xf32, #tpu.memory_space<vmem>>) attributes {dimension_semantics = [#tpu.dimension_semantics<parallel>], iteration_bounds = array<i64: 1>, scalar_prefetch = 0 : i64, scratch_operands = 0 : i64, tpu.core_type = #tpu.core_type<tc>, window_params = [{transform_indices = @transform_0, window_bounds = array<i64: 2, 16, 16>}, {transform_indices = @transform_1, window_bounds = array<i64: 2, 16, 16>}, {pipeline_mode = #tpu.pipeline_mode<synchronous>, transform_indices = @transform_2, window_bounds = array<i64: 8, 32>}, {pipeline_mode = #tpu.pipeline_mode<synchronous>, transform_indices = @transform_3, window_bounds = array<i64: 1, 32>}, {transform_indices = @transform_4, window_bounds = array<i64: 1, 1>}, {pipeline_mode = #tpu.pipeline_mode<synchronous>, transform_indices = @transform_5, window_bounds = array<i64: 32, 32>}, {transform_indices = @transform_6, window_bounds = array<i64: 1, 1>}, {transform_indices = @transform_7, window_bounds = array<i64: 2, 1, 32>}]} {
    %c0 = arith.constant 0 : index
    %c0_0 = arith.constant 0 : index
    %c0_1 = arith.constant 0 : index
    %0 = vector.load %arg1[%c0, %c0_0, %c0_1] : memref<2x16x16xf32, #tpu.memory_space<vmem>>, vector<2x16x16xf32>
    %c0_2 = arith.constant 0 : index
    %c0_3 = arith.constant 0 : index
    %c0_4 = arith.constant 0 : index
    %1 = vector.load %arg2[%c0_2, %c0_3, %c0_4] : memref<2x16x16xf32, #tpu.memory_space<vmem>>, vector<2x16x16xf32>
    %c0_5 = arith.constant 0 : index
    %c0_6 = arith.constant 0 : index
    %2 = vector.load %arg3[%c0_5, %c0_6] : memref<8x32xf32, #tpu.memory_space<vmem>>, vector<8x32xf32>
    %c0_7 = arith.constant 0 : index
    %c0_8 = arith.constant 0 : index
    %3 = vector.load %arg4[%c0_7, %c0_8] : memref<1x32xf32, #tpu.memory_space<vmem>>, vector<1x32xf32>
    %c0_9 = arith.constant 0 : index
    %c0_10 = arith.constant 0 : index
    %4 = vector.load %arg6[%c0_9, %c0_10] : memref<32x32xf32, #tpu.memory_space<vmem>>, vector<32x32xf32>
    %c0_11 = arith.constant 0 : index
    %c0_12 = arith.constant 0 : index
    %5 = memref.load %arg5[%c0_11, %c0_12] : memref<1x1xf32, #tpu.memory_space<smem>>
    %c0_13 = arith.constant 0 : index
    %c0_14 = arith.constant 0 : index
    %6 = memref.load %arg7[%c0_13, %c0_14] : memref<1x1xf32, #tpu.memory_space<smem>>
    "tpu.trace_start"() <{level = 10 : i32, message = "bnm,bmf->bnf"}> : () -> ()
    %cst = arith.constant dense<0.000000e+00> : vector<2x16x16xf32>
    %7 = tpu.matmul %1, %0, %cst {dimension_numbers = #tpu.dot_dimension_numbers<[2], [1], [1], [2], [0, 0, 0, 1, 1, 2], [0], [0]>} : vector<2x16x16xf32>, vector<2x16x16xf32>, vector<2x16x16xf32> -> vector<2x16x16xf32>
    "tpu.trace_stop"() : () -> ()
    %8 = vector.extract_strided_slice %7 {offsets = [0, 0, 0], sizes = [2, 16, 8], strides = [1, 1, 1]} : vector<2x16x16xf32> to vector<2x16x8xf32>
    %9 = vector.extract_strided_slice %7 {offsets = [0, 0, 8], sizes = [2, 16, 8], strides = [1, 1, 1]} : vector<2x16x16xf32> to vector<2x16x8xf32>
    %10 = tpu.concatenate %8, %9 in 1 : vector<2x16x8xf32>, vector<2x16x8xf32> -> vector<2x32x8xf32>
    %11 = vector.shape_cast %10 : vector<2x32x8xf32> to vector<64x8xf32>
    %cst_15 = arith.constant dense<0.000000e+00> : vector<64x32xf32>
    %12 = tpu.matmul %11, %2, %cst_15 {dimension_numbers = #tpu.dot_dimension_numbers<[1], [0], [0], [1], [0, 0, 1, 1], [], []>} : vector<64x8xf32>, vector<8x32xf32>, vector<64x32xf32> -> vector<64x32xf32>
    %13 = vector.shape_cast %12 : vector<64x32xf32> to vector<2x32x32xf32>
    %14 = vector.shape_cast %3 : vector<1x32xf32> to vector<1x1x32xf32>
    %15 = vector.broadcast %14 : vector<1x1x32xf32> to vector<2x32x32xf32>
    %16 = arith.addf %13, %15 : vector<2x32x32xf32>
    %cst_16 = arith.constant 0.000000e+00 : f32
    %17 = vector.broadcast %cst_16 : f32 to vector<2x32x32xf32>
    %18 = arith.cmpf ogt, %16, %17 : vector<2x32x32xf32>
    %19 = vector.broadcast %5 : f32 to vector<2x32x32xf32>
    %20 = arith.mulf %19, %16 : vector<2x32x32xf32>
    %21 = arith.select %18, %16, %20 : vector<2x32x32xi1>, vector<2x32x32xf32>
    %22 = vector.extract_strided_slice %21 {offsets = [0, 0, 0], sizes = [2, 16, 32], strides = [1, 1, 1]} : vector<2x32x32xf32> to vector<2x16x32xf32>
    %cst_17 = arith.constant dense<0.000000e+00> : vector<2x32xf32>
    %23 = vector.multi_reduction <add>, %22, %cst_17 [1] : vector<2x16x32xf32> to vector<2x32xf32>
    %cst_18 = arith.constant 1.600000e+01 : f32
    %24 = vector.broadcast %cst_18 : f32 to vector<2x32xf32>
    %25 = arith.divf %23, %24 : vector<2x32xf32>
    %26 = arith.negf %25 : vector<2x32xf32>
    %27 = math.exp %26 : vector<2x32xf32>
    %cst_19 = arith.constant 1.000000e+00 : f32
    %28 = vector.broadcast %cst_19 : f32 to vector<2x32xf32>
    %29 = arith.addf %28, %27 : vector<2x32xf32>
    %30 = arith.divf %28, %29 : vector<2x32xf32>
    %cst_20 = arith.constant dense<0.000000e+00> : vector<2x32xf32>
    %31 = tpu.matmul %30, %4, %cst_20 {dimension_numbers = #tpu.dot_dimension_numbers<[1], [1], [0], [0], [0, 0, 1, 0], [], []>} : vector<2x32xf32>, vector<32x32xf32>, vector<2x32xf32> -> vector<2x32xf32>
    %32 = vector.shape_cast %31 : vector<2x32xf32> to vector<2x1x32xf32>
    %33 = vector.broadcast %32 : vector<2x1x32xf32> to vector<2x32x32xf32>
    %34 = arith.mulf %21, %33 : vector<2x32x32xf32>
    %cst_21 = arith.constant dense<0.000000e+00> : vector<2x32xf32>
    %35 = vector.multi_reduction <add>, %34, %cst_21 [2] : vector<2x32x32xf32> to vector<2x32xf32>
    %36 = vector.broadcast %6 : f32 to vector<2x32xf32>
    %37 = arith.addf %35, %36 : vector<2x32xf32>
    %c0_22 = arith.constant 0 : index
    %c0_23 = arith.constant 0 : index
    %c0_24 = arith.constant 0 : index
    %38 = vector.load %arg8[%c0_22, %c0_23, %c0_24] : memref<2x1x32xf32, #tpu.memory_space<vmem>>, vector<2x1x32xf32>
    %39 = vector.shape_cast %38 : vector<2x1x32xf32> to vector<2x32xf32>
    %40 = vector.shape_cast %37 : vector<2x32xf32> to vector<2x1x32xf32>
    tpu.vector_store %arg8[%c0_22, %c0_23, %c0_24], %40 {strides = array<i32>} : memref<2x1x32xf32, #tpu.memory_space<vmem>>, vector<2x1x32xf32>,
    return
  }
  func.func @transform_0(%arg0: i32) -> (i32, i32, i32) {
    %c0_i32 = arith.constant 0 : i32
    %c0_i32_0 = arith.constant 0 : i32
    %c0_i32_1 = arith.constant 0 : i32
    return %arg0, %c0_i32, %c0_i32_0 : i32, i32, i32
  }
  func.func @transform_1(%arg0: i32) -> (i32, i32, i32) {
    %c0_i32 = arith.constant 0 : i32
    %c0_i32_0 = arith.constant 0 : i32
    %c0_i32_1 = arith.constant 0 : i32
    return %arg0, %c0_i32, %c0_i32_0 : i32, i32, i32
  }
  func.func @transform_2(%arg0: i32) -> (i32, i32) {
    %c0_i32 = arith.constant 0 : i32
    %c0_i32_0 = arith.constant 0 : i32
    %c0_i32_1 = arith.constant 0 : i32
    return %c0_i32, %c0_i32_0 : i32, i32
  }
  func.func @transform_3(%arg0: i32) -> (i32, i32) {
    %c0_i32 = arith.constant 0 : i32
    %c0_i32_0 = arith.constant 0 : i32
    %c0_i32_1 = arith.constant 0 : i32
    return %c0_i32, %c0_i32_0 : i32, i32
  }
  func.func @transform_4(%arg0: i32) -> (i32, i32) {
    %c0_i32 = arith.constant 0 : i32
    %c0_i32_0 = arith.constant 0 : i32
    %c0_i32_1 = arith.constant 0 : i32
    return %c0_i32, %c0_i32_0 : i32, i32
  }
  func.func @transform_5(%arg0: i32) -> (i32, i32) {
    %c0_i32 = arith.constant 0 : i32
    %c0_i32_0 = arith.constant 0 : i32
    %c0_i32_1 = arith.constant 0 : i32
    return %c0_i32, %c0_i32_0 : i32, i32
  }
  func.func @transform_6(%arg0: i32) -> (i32, i32) {
    %c0_i32 = arith.constant 0 : i32
    %c0_i32_0 = arith.constant 0 : i32
    %c0_i32_1 = arith.constant 0 : i32
    return %c0_i32, %c0_i32_0 : i32, i32
  }
  func.func @transform_7(%arg0: i32) -> (i32, i32, i32) {
    %c0_i32 = arith.constant 0 : i32
    %c0_i32_0 = arith.constant 0 : i32
    %c0_i32_1 = arith.constant 0 : i32
    return %arg0, %c0_i32, %c0_i32_0 : i32, i32, i32
  }
}

</mosaic_0001>

<llo_original>
// kernel: dgi_forward.1
$region0: #{dgi_forward.1}
  #allocation0 [shape = 'u32[]', space=smem, size = 0x4, offset = 0x4, fixed_abs, tag = 'smem constant byte address 0x4 - core index']
  #allocation1 [shape = 'u32[144,128]{1,0:T(1,128)}', space=vmem, size = 0x12000, scoped, tag = 'internal scratch']
  #allocation2 [shape = 'f32[1,1]{1,0:T(1,128)S(6)}', space=smem, size = 0x200, scoped, tag = 'scoped memory for dgi_forward.1']
  #allocation3 [shape = 'f32[1,1]{1,0:T(1,128)S(6)}', space=smem, size = 0x200, scoped, tag = 'scoped memory for dgi_forward.1']
  %s0 = inlined_call_operand.vmem [shape: f32[2,16,16], index: 0, kind: input, shape index: {}]
  %s1 = inlined_call_operand.vmem [shape: f32[2,16,16], index: 1, kind: input, shape index: {}]
  %s2 = inlined_call_operand.vmem [shape: f32[8,32], index: 2, kind: input, shape index: {}]
  %s3 = inlined_call_operand.vmem [shape: f32[1,32], index: 3, kind: input, shape index: {}]
  %s4 = inlined_call_operand.<no memory space> [shape: f32[1,1], index: 4, kind: input, shape index: {}]
  %s5 = inlined_call_operand.vmem [shape: f32[32,32], index: 5, kind: input, shape index: {}]
  %s6 = inlined_call_operand.<no memory space> [shape: f32[1,1], index: 6, kind: input, shape index: {}]
  %s7 = inlined_call_operand.hbm [shape: f32[2,1,32], index: 7, kind: output, shape index: {}]
  %s8 = sld [smem:[#allocation0]]
  $region38: #{dgi_forward.1} parent=0
    _
  %s10 = ssub.s32 1, %s8
  %s11 = scalar_select 0, %s10, %s8
  %12 = sst [smem:[#allocation2]] %s4
  %13 = sst [smem:[#allocation3]] %s6
  $region1: #{dgi_forward.1} parent=0
    #allocation4 [shape = 'u8[1024]{0}', space=vmem, size = 0x400, scoped, tag = 'output window, operand 0, single buffered']
    #allocation5 [shape = 's32[1]{0}', space=sflag, size = 0x4, scoped, tag = 'scoped memory for dgi_forward.1']
    %14 = vsyncpa [#allocation5], 0
    // Predicated region
    $region2: #{dgi_forward.1} parent=1 // pred_check
      _
    $region3: #{dgi_forward.1} parent=1 // pred_check_branch
      %16 = sbr.rel (0) target = $region5
    $region4: #{dgi_forward.1} parent=1 // pred_region
      _
    $region5: #{dgi_forward.1} parent=1 // pred_fallthru
      _
    // Predicated region
    $region6: #{dgi_forward.1} parent=1 // pred_check
      _
    $region7: #{dgi_forward.1} parent=1 // pred_check_branch
      %18 = sbr.rel (0) target = $region9
    $region8: #{dgi_forward.1} parent=1 // pred_region
      _
    $region9: #{dgi_forward.1} parent=1 // pred_fallthru
      _
    // Predicated region
    $region10: #{dgi_forward.1} parent=1 // pred_check
      _
    $region11: #{dgi_forward.1} parent=1 // pred_check_branch
      %20 = sbr.rel (0) target = $region13
    $region12: #{dgi_forward.1} parent=1 // pred_region
      _
    $region13: #{dgi_forward.1} parent=1 // pred_fallthru
      _
    // Predicated region
    $region14: #{dgi_forward.1} parent=1 // pred_check
      _
    $region15: #{dgi_forward.1} parent=1 // pred_check_branch
      %22 = sbr.rel (0) target = $region17
    $region16: #{dgi_forward.1} parent=1 // pred_region
      _
    $region17: #{dgi_forward.1} parent=1 // pred_fallthru
      _
    // Predicated region
    $region18: #{dgi_forward.1} parent=1 // pred_check
      _
    $region19: #{dgi_forward.1} parent=1 // pred_check_branch
      %24 = sbr.rel (0) target = $region21
    $region20: #{dgi_forward.1} parent=1 // pred_region
      _
    $region21: #{dgi_forward.1} parent=1 // pred_fallthru
      _
    // Predicated region
    $region22: #{dgi_forward.1} parent=1 // pred_check
      _
    $region23: #{dgi_forward.1} parent=1 // pred_check_branch
      %26 = sbr.rel (0) target = $region25
    $region24: #{dgi_forward.1} parent=1 // pred_region
      _
    $region25: #{dgi_forward.1} parent=1 // pred_fallthru
      _
    // Predicated region
    $region26: #{dgi_forward.1} parent=1 // pred_check
      _
    $region27: #{dgi_forward.1} parent=1 // pred_check_branch
      %28 = sbr.rel (0) target = $region29
    $region28: #{dgi_forward.1} parent=1 // pred_region
      _
    $region29: #{dgi_forward.1} parent=1 // pred_fallthru
      _
    %v29 = vld [vmem:[%s0] sm:$0xff]
    %v30 = vld [vmem:[%s0 + $0x8] sm:$0xff]
    %v31 = vld [vmem:[%s0 + $0x10] sm:$0xff]
    %v32 = vld [vmem:[%s0 + $0x18] sm:$0xff]
    %v33 = vld [vmem:[%s1] sm:$0xff]
    %v34 = vld [vmem:[%s1 + $0x8] sm:$0xff]
    %v35 = vld [vmem:[%s1 + $0x10] sm:$0xff]
    %v36 = vld [vmem:[%s1 + $0x18] sm:$0xff]
    %v37 = vld [vmem:[%s2] sm:$0xff]
    %v38 = vld [vmem:[%s3] sm:$0x1]
    %v39 = vld [vmem:[%s5] sm:$0xff]
    %v40 = vld [vmem:[%s5 + $0x8] sm:$0xff]
    %v41 = vld [vmem:[%s5 + $0x10] sm:$0xff]
    %v42 = vld [vmem:[%s5 + $0x18] sm:$0xff]
    %s43 = sld [smem:[#allocation2]]
    %s44 = sld [smem:[#allocation3]]
    %vm45 = vcmask 130048
    %v47 = vsel %vm45, %v33, 0
    %v50 = vsel %vm45, %v34, 0
    %52 = vmatprep.subr.mxu0 0.0
    %53 = vmatpush1.msra.mxu0 %v29
    %54 = vmatprep.subr.mxu0 0.0
    %55 = vmatpush1.msra.mxu0 %v30
    %56 = vmatprep.subr.mxu0 0.0
    %57 = vmatpush1.msra.mxu0 0.0
    %58 = vmatprep.subr.mxu0 0.0
    %59 = vmatpush1.msra.mxu0 0.0
    %60 = vmatprep.subr.mxu0 0.0
    %61 = vmatpush1.msra.mxu0 0.0
    %62 = vmatprep.subr.mxu0 0.0
    %63 = vmatpush1.msra.mxu0 0.0
    %64 = vmatprep.subr.mxu0 0.0
    %65 = vmatpush1.msra.mxu0 0.0
    %66 = vmatprep.subr.mxu0 0.0
    %67 = vmatpush1.msra.mxu0 0.0
    %68 = vmatprep.subr.mxu0 0.0
    %69 = vmatpush1.msra.mxu0 0.0
    %70 = vmatprep.subr.mxu0 0.0
    %71 = vmatpush1.msra.mxu0 0.0
    %72 = vmatprep.subr.mxu0 0.0
    %73 = vmatpush1.msra.mxu0 0.0
    %74 = vmatprep.subr.mxu0 0.0
    %75 = vmatpush1.msra.mxu0 0.0
    %76 = vmatprep.subr.mxu0 0.0
    %77 = vmatpush1.msra.mxu0 0.0
    %78 = vmatprep.subr.mxu0 0.0
    %79 = vmatpush1.msra.mxu0 0.0
    %80 = vmatprep.subr.mxu0 0.0
    %81 = vmatpush1.msra.mxu0 0.0
    %82 = vmatprep.subr.mxu0 0.0
    %83 = vmatpush1.msra.mxu0 0.0
    %84 = vmatprep.subr.mxu0 0.0
    %85 = vmatpush1.msra.mxu0 0.0
    %86 = vmatprep.subr.mxu0 0.0
    %87 = vmatpush1.msra.mxu0 0.0
    %88 = vmatprep.subr.mxu0 0.0
    %89 = vmatpush1.msra.mxu0 0.0
    %90 = vmatprep.subr.mxu0 0.0
    %91 = vmatpush1.msra.mxu0 0.0
    %92 = vmatprep.subr.mxu0 0.0
    %93 = vmatpush1.msra.mxu0 0.0
    %94 = vmatprep.subr.mxu0 0.0
    %95 = vmatpush1.msra.mxu0 0.0
    %96 = vmatprep.subr.mxu0 0.0
    %97 = vmatpush1.msra.mxu0 0.0
    %98 = vmatprep.subr.mxu0 0.0
    %99 = vmatpush1.msra.mxu0 0.0
    %100 = vmatprep.subr.mxu0 0.0
    %101 = vmatpush1.msra.mxu0 0.0
    %102 = vmatprep.subr.mxu0 0.0
    %103 = vmatpush1.msra.mxu0 0.0
    %104 = vmatprep.subr.mxu0 0.0
    %105 = vmatpush1.msra.mxu0 0.0
    %106 = vmatprep.subr.mxu0 0.0
    %107 = vmatpush1.msra.mxu0 0.0
    %108 = vmatprep.subr.mxu0 0.0
    %109 = vmatpush1.msra.mxu0 0.0
    %110 = vmatprep.subr.mxu0 0.0
    %111 = vmatpush1.msra.mxu0 0.0
    %112 = vmatprep.subr.mxu0 0.0
    %113 = vmatpush1.msra.mxu0 0.0
    %114 = vmatprep.subr.mxu0 0.0
    %115 = vmatpush1.msra.mxu0 0.0
    %116 = vmatprep.mubr.f32.mxu0 0.0
    %117 = vmatmul.mubr.f32.gmra.mrb[0].mxu0 %v47
    %v118 = vpop.f32.mrb[0].mxu0
    %v119 = vadd.f32 0.0, %v118
    %v120 = vpop.f32.mrb[0].mxu0
    %121 = vmatprep.mubr.f32.mxu0 0.0
    %122 = vmatmul.mubr.f32.gmra.mrb[0].mxu0 %v50
    %v123 = vpop.f32.mrb[0].mxu0
    %v124 = vadd.f32 0.0, %v123
    %v125 = vpop.f32.mrb[0].mxu0
    %126 = vdwg.mxu0
    %v128 = vsel %vm45, %v35, 0
    %v131 = vsel %vm45, %v36, 0
    %133 = vmatprep.subr.mxu0 0.0
    %134 = vmatpush1.msra.mxu0 %v31
    %135 = vmatprep.subr.mxu0 0.0
    %136 = vmatpush1.msra.mxu0 %v32
    %137 = vmatprep.subr.mxu0 0.0
    %138 = vmatpush1.msra.mxu0 0.0
    %139 = vmatprep.subr.mxu0 0.0
    %140 = vmatpush1.msra.mxu0 0.0
    %141 = vmatprep.subr.mxu0 0.0
    %142 = vmatpush1.msra.mxu0 0.0
    %143 = vmatprep.subr.mxu0 0.0
    %144 = vmatpush1.msra.mxu0 0.0
    %145 = vmatprep.subr.mxu0 0.0
    %146 = vmatpush1.msra.mxu0 0.0
    %147 = vmatprep.subr.mxu0 0.0
    %148 = vmatpush1.msra.mxu0 0.0
    %149 = vmatprep.subr.mxu0 0.0
    %150 = vmatpush1.msra.mxu0 0.0
    %151 = vmatprep.subr.mxu0 0.0
    %152 = vmatpush1.msra.mxu0 0.0
    %153 = vmatprep.subr.mxu0 0.0
    %154 = vmatpush1.msra.mxu0 0.0
    %155 = vmatprep.subr.mxu0 0.0
    %156 = vmatpush1.msra.mxu0 0.0
    %157 = vmatprep.subr.mxu0 0.0
    %158 = vmatpush1.msra.mxu0 0.0
    %159 = vmatprep.subr.mxu0 0.0
    %160 = vmatpush1.msra.mxu0 0.0
    %161 = vmatprep.subr.mxu0 0.0
    %162 = vmatpush1.msra.mxu0 0.0
    %163 = vmatprep.subr.mxu0 0.0
    %164 = vmatpush1.msra.mxu0 0.0
    %165 = vmatprep.subr.mxu0 0.0
    %166 = vmatpush1.msra.mxu0 0.0
    %167 = vmatprep.subr.mxu0 0.0
    %168 = vmatpush1.msra.mxu0 0.0
    %169 = vmatprep.subr.mxu0 0.0
    %170 = vmatpush1.msra.mxu0 0.0
    %171 = vmatprep.subr.mxu0 0.0
    %172 = vmatpush1.msra.mxu0 0.0
    %173 = vmatprep.subr.mxu0 0.0
    %174 = vmatpush1.msra.mxu0 0.0
    %175 = vmatprep.subr.mxu0 0.0
    %176 = vmatpush1.msra.mxu0 0.0
    %177 = vmatprep.subr.mxu0 0.0
    %178 = vmatpush1.msra.mxu0 0.0
    %179 = vmatprep.subr.mxu0 0.0
    %180 = vmatpush1.msra.mxu0 0.0
    %181 = vmatprep.subr.mxu0 0.0
    %182 = vmatpush1.msra.mxu0 0.0
    %183 = vmatprep.subr.mxu0 0.0
    %184 = vmatpush1.msra.mxu0 0.0
    %185 = vmatprep.subr.mxu0 0.0
    %186 = vmatpush1.msra.mxu0 0.0
    %187 = vmatprep.subr.mxu0 0.0
    %188 = vmatpush1.msra.mxu0 0.0
    %189 = vmatprep.subr.mxu0 0.0
    %190 = vmatpush1.msra.mxu0 0.0
    %191 = vmatprep.subr.mxu0 0.0
    %192 = vmatpush1.msra.mxu0 0.0
    %193 = vmatprep.subr.mxu0 0.0
    %194 = vmatpush1.msra.mxu0 0.0
    %195 = vmatprep.subr.mxu0 0.0
    %196 = vmatpush1.msra.mxu0 0.0
    %197 = vmatprep.mubr.f32.mxu0 0.0
    %198 = vmatmul.mubr.f32.gmra.mrb[0].mxu0 %v128
    %v199 = vpop.f32.mrb[0].mxu0
    %v200 = vadd.f32 0.0, %v199
    %v201 = vpop.f32.mrb[0].mxu0
    %202 = vmatprep.mubr.f32.mxu0 0.0
    %203 = vmatmul.mubr.f32.gmra.mrb[0].mxu0 %v131
    %v204 = vpop.f32.mrb[0].mxu0
    %v205 = vadd.f32 0.0, %v204
    %v206 = vpop.f32.mrb[0].mxu0
    %207 = vdwg.mxu0
    %212 = vrot.lane.b32.xlu0 %v119, 120
    %v213 = vpop.permute.xlu0 %212
    %214 = vrot.lane.b32.xlu0 %v124, 120
    %v215 = vpop.permute.xlu0 %214
    %216 = vrot.lane.b32.xlu0 %v200, 120
    %v217 = vpop.permute.xlu0 %216
    %218 = vrot.lane.b32.xlu0 %v205, 120
    %v219 = vpop.permute.xlu0 %218
    %vm220 = vcmask 64512
    %v221 = vsel %vm220, %v119, 0
    %v223 = vsel %vm220, %v124, 0
    %v225 = vsel %vm220, %v213, 0
    %v227 = vsel %vm220, %v215, 0
    %v229 = vsel %vm220, %v200, 0
    %v231 = vsel %vm220, %v205, 0
    %v233 = vsel %vm220, %v217, 0
    %v235 = vsel %vm220, %v219, 0
    %237 = vmatprep.subr.mxu0 0.0
    %238 = vmatpush1.msra.mxu0 %v37
    %239 = vmatprep.subr.mxu0 0.0
    %240 = vmatpush1.msra.mxu0 0.0
    %241 = vmatprep.subr.mxu0 0.0
    %242 = vmatpush1.msra.mxu0 0.0
    %243 = vmatprep.subr.mxu0 0.0
    %244 = vmatpush1.msra.mxu0 0.0
    %245 = vmatprep.subr.mxu0 0.0
    %246 = vmatpush1.msra.mxu0 0.0
    %247 = vmatprep.subr.mxu0 0.0
    %248 = vmatpush1.msra.mxu0 0.0
    %249 = vmatprep.subr.mxu0 0.0
    %250 = vmatpush1.msra.mxu0 0.0
    %251 = vmatprep.subr.mxu0 0.0
    %252 = vmatpush1.msra.mxu0 0.0
    %253 = vmatprep.subr.mxu0 0.0
    %254 = vmatpush1.msra.mxu0 0.0
    %255 = vmatprep.subr.mxu0 0.0
    %256 = vmatpush1.msra.mxu0 0.0
    %257 = vmatprep.subr.mxu0 0.0
    %258 = vmatpush1.msra.mxu0 0.0
    %259 = vmatprep.subr.mxu0 0.0
    %260 = vmatpush1.msra.mxu0 0.0
    %261 = vmatprep.subr.mxu0 0.0
    %262 = vmatpush1.msra.mxu0 0.0
    %263 = vmatprep.subr.mxu0 0.0
    %264 = vmatpush1.msra.mxu0 0.0
    %265 = vmatprep.subr.mxu0 0.0
    %266 = vmatpush1.msra.mxu0 0.0
    %267 = vmatprep.subr.mxu0 0.0
    %268 = vmatpush1.msra.mxu0 0.0
    %269 = vmatprep.subr.mxu0 0.0
    %270 = vmatpush1.msra.mxu0 0.0
    %271 = vmatprep.subr.mxu0 0.0
    %272 = vmatpush1.msra.mxu0 0.0
    %273 = vmatprep.subr.mxu0 0.0
    %274 = vmatpush1.msra.mxu0 0.0
    %275 = vmatprep.subr.mxu0 0.0
    %276 = vmatpush1.msra.mxu0 0.0
    %277 = vmatprep.subr.mxu0 0.0
    %278 = vmatpush1.msra.mxu0 0.0
    %279 = vmatprep.subr.mxu0 0.0
    %280 = vmatpush1.msra.mxu0 0.0
    %281 = vmatprep.subr.mxu0 0.0
    %282 = vmatpush1.msra.mxu0 0.0
    %283 = vmatprep.subr.mxu0 0.0
    %284 = vmatpush1.msra.mxu0 0.0
    %285 = vmatprep.subr.mxu0 0.0
    %286 = vmatpush1.msra.mxu0 0.0
    %287 = vmatprep.subr.mxu0 0.0
    %288 = vmatpush1.msra.mxu0 0.0
    %289 = vmatprep.subr.mxu0 0.0
    %290 = vmatpush1.msra.mxu0 0.0
    %291 = vmatprep.subr.mxu0 0.0
    %292 = vmatpush1.msra.mxu0 0.0
    %293 = vmatprep.subr.mxu0 0.0
    %294 = vmatpush1.msra.mxu0 0.0
    %295 = vmatprep.subr.mxu0 0.0
    %296 = vmatpush1.msra.mxu0 0.0
    %297 = vmatprep.subr.mxu0 0.0
    %298 = vmatpush1.msra.mxu0 0.0
    %299 = vmatprep.subr.mxu0 0.0
    %300 = vmatpush1.msra.mxu0 0.0
    %301 = vmatprep.mubr.f32.mxu0 0.0
    %302 = vmatmul.mubr.f32.gmra.mrb[0].mxu0 %v221
    %v303 = vpop.f32.mrb[0].mxu0
    %v304 = vadd.f32 0.0, %v303
    %v305 = vpop.f32.mrb[0].mxu0
    %306 = vmatprep.mubr.f32.mxu0 0.0
    %307 = vmatmul.mubr.f32.gmra.mrb[0].mxu0 %v223
    %v308 = vpop.f32.mrb[0].mxu0
    %v309 = vadd.f32 0.0, %v308
    %v310 = vpop.f32.mrb[0].mxu0
    %311 = vmatprep.mubr.f32.mxu0 0.0
    %312 = vmatmul.mubr.f32.gmra.mrb[0].mxu0 %v225
    %v313 = vpop.f32.mrb[0].mxu0
    %v314 = vadd.f32 0.0, %v313
    %v315 = vpop.f32.mrb[0].mxu0
    %316 = vmatprep.mubr.f32.mxu0 0.0
    %317 = vmatmul.mubr.f32.gmra.mrb[0].mxu0 %v227
    %v318 = vpop.f32.mrb[0].mxu0
    %v319 = vadd.f32 0.0, %v318
    %v320 = vpop.f32.mrb[0].mxu0
    %321 = vmatprep.mubr.f32.mxu0 0.0
    %322 = vmatmul.mubr.f32.gmra.mrb[0].mxu0 %v229
    %v323 = vpop.f32.mrb[0].mxu0
    %v324 = vadd.f32 0.0, %v323
    %v325 = vpop.f32.mrb[0].mxu0
    %326 = vmatprep.mubr.f32.mxu0 0.0
    %327 = vmatmul.mubr.f32.gmra.mrb[0].mxu0 %v231
    %v328 = vpop.f32.mrb[0].mxu0
    %v329 = vadd.f32 0.0, %v328
    %v330 = vpop.f32.mrb[0].mxu0
    %331 = vmatprep.mubr.f32.mxu0 0.0
    %332 = vmatmul.mubr.f32.gmra.mrb[0].mxu0 %v233
    %v333 = vpop.f32.mrb[0].mxu0
    %v334 = vadd.f32 0.0, %v333
    %v335 = vpop.f32.mrb[0].mxu0
    %336 = vmatprep.mubr.f32.mxu0 0.0
    %337 = vmatmul.mubr.f32.gmra.mrb[0].mxu0 %v235
    %v338 = vpop.f32.mrb[0].mxu0
    %v339 = vadd.f32 0.0, %v338
    %v340 = vpop.f32.mrb[0].mxu0
    %341 = vdwg.mxu0
    %v343 = vlaneseq
    %v344 = vshrl.u32 %v343, 7
    %v345 = vsub.s32 0, %v344
    %v346 = vrot.slane %v38, %v345
    %v348 = vadd.f32 %v304, %v346
    %v349 = vadd.f32 %v309, %v346
    %v350 = vadd.f32 %v314, %v346
    %v351 = vadd.f32 %v319, %v346
    %v352 = vadd.f32 %v324, %v346
    %v353 = vadd.f32 %v329, %v346
    %v354 = vadd.f32 %v334, %v346
    %v355 = vadd.f32 %v339, %v346
    %vm356 = vcmp.gt.f32.partialorder %v348, 0.0
    %vm357 = vcmp.gt.f32.partialorder %v349, 0.0
    %vm358 = vcmp.gt.f32.partialorder %v350, 0.0
    %vm359 = vcmp.gt.f32.partialorder %v351, 0.0
    %vm360 = vcmp.gt.f32.partialorder %v352, 0.0
    %vm361 = vcmp.gt.f32.partialorder %v353, 0.0
    %vm362 = vcmp.gt.f32.partialorder %v354, 0.0
    %vm363 = vcmp.gt.f32.partialorder %v355, 0.0
    %v364 = vstv %s43
    %v365 = vmul.f32 %v364, %v348
    %v366 = vmul.f32 %v364, %v349
    %v367 = vmul.f32 %v364, %v350
    %v368 = vmul.f32 %v364, %v351
    %v369 = vmul.f32 %v364, %v352
    %v370 = vmul.f32 %v364, %v353
    %v371 = vmul.f32 %v364, %v354
    %v372 = vmul.f32 %v364, %v355
    %v373 = vsel %vm356, %v348, %v365
    %v374 = vsel %vm357, %v349, %v366
    %v375 = vsel %vm358, %v350, %v367
    %v376 = vsel %vm359, %v351, %v368
    %v377 = vsel %vm360, %v352, %v369
    %v378 = vsel %vm361, %v353, %v370
    %v379 = vsel %vm362, %v354, %v371
    %v380 = vsel %vm363, %v355, %v372
    %vm381 = vcmask 261120
    %v382 = vsel %vm381, %v373, 0.0
    %v383 = vsel %vm381, %v374, 0.0
    %v384 = vadd.f32 %v382, %v383
    %v385 = vrot.slane %v384, 4
    %v386 = vadd.f32 %v384, %v385
    %v387 = vrot.slane %v386, 2
    %v388 = vadd.f32 %v386, %v387
    %v389 = vrot.slane %v388, 1
    %v390 = vadd.f32 %v388, %v389
    %v391 = vsel %vm381, %v377, 0.0
    %v392 = vsel %vm381, %v378, 0.0
    %v393 = vadd.f32 %v391, %v392
    %v394 = vrot.slane %v393, 4
    %v395 = vadd.f32 %v393, %v394
    %v396 = vrot.slane %v395, 2
    %v397 = vadd.f32 %v395, %v396
    %v398 = vrot.slane %v397, 1
    %v399 = vadd.f32 %v397, %v398
    %v400 = vrcp.pop 16.0
    %v401 = vmul.f32 %v390, %v400
    %v402 = vmul.f32 %v399, %v400
    %v403 = vxor.u32 %v401, 2147483648
    %v404 = vxor.u32 %v402, 2147483648
    %v405 = vmul.f32 %v403, 1.442695
    %v406 = vpow.pop %v405
    %v407 = vmul.f32 %v404, 1.442695
    %v408 = vpow.pop %v407
    %v409 = vadd.f32 %v406, 1.0
    %v410 = vadd.f32 %v408, 1.0
    %v411 = vrcp.pop %v409
    %v412 = vmul.f32 1.0, %v411
    %v413 = vrcp.pop %v410
    %v414 = vmul.f32 1.0, %v413
    %vm417 = vcmask 1041409
    %v418 = vsel %vm417, %v414, %v412
    %v419 = vsel %vm381, %v418, 0
    %v422 = vsel %vm381, %v39, 0
    %v425 = vsel %vm381, %v40, 0
    %v428 = vsel %vm381, %v41, 0
    %v431 = vsel %vm381, %v42, 0
    %433 = vmatprep.subr.mxu0 0.0
    %434 = vmatpush1.xpose.msra.mxu0 %v422
    %435 = vmatprep.subr.mxu0 0.0
    %436 = vmatpush1.xpose.msra.mxu0 %v425
    %437 = vmatprep.subr.mxu0 0.0
    %438 = vmatpush1.xpose.msra.mxu0 %v428
    %439 = vmatprep.subr.mxu0 0.0
    %440 = vmatpush1.xpose.msra.mxu0 %v431
    %441 = vmatprep.subr.mxu0 0.0
    %442 = vmatpush1.xpose.msra.mxu0 0.0
    %443 = vmatprep.subr.mxu0 0.0
    %444 = vmatpush1.xpose.msra.mxu0 0.0
    %445 = vmatprep.subr.mxu0 0.0
    %446 = vmatpush1.xpose.msra.mxu0 0.0
    %447 = vmatprep.subr.mxu0 0.0
    %448 = vmatpush1.xpose.msra.mxu0 0.0
    %449 = vmatprep.subr.mxu0 0.0
    %450 = vmatpush1.xpose.msra.mxu0 0.0
    %451 = vmatprep.subr.mxu0 0.0
    %452 = vmatpush1.xpose.msra.mxu0 0.0
    %453 = vmatprep.subr.mxu0 0.0
    %454 = vmatpush1.xpose.msra.mxu0 0.0
    %455 = vmatprep.subr.mxu0 0.0
    %456 = vmatpush1.xpose.msra.mxu0 0.0
    %457 = vmatprep.subr.mxu0 0.0
    %458 = vmatpush1.xpose.msra.mxu0 0.0
    %459 = vmatprep.subr.mxu0 0.0
    %460 = vmatpush1.xpose.msra.mxu0 0.0
    %461 = vmatprep.subr.mxu0 0.0
    %462 = vmatpush1.xpose.msra.mxu0 0.0
    %463 = vmatprep.subr.mxu0 0.0
    %464 = vmatpush1.xpose.msra.mxu0 0.0
    %465 = vmatprep.subr.mxu0 0.0
    %466 = vmatpush1.xpose.msra.mxu0 0.0
    %467 = vmatprep.subr.mxu0 0.0
    %468 = vmatpush1.xpose.msra.mxu0 0.0
    %469 = vmatprep.subr.mxu0 0.0
    %470 = vmatpush1.xpose.msra.mxu0 0.0
    %471 = vmatprep.subr.mxu0 0.0
    %472 = vmatpush1.xpose.msra.mxu0 0.0
    %473 = vmatprep.subr.mxu0 0.0
    %474 = vmatpush1.xpose.msra.mxu0 0.0
    %475 = vmatprep.subr.mxu0 0.0
    %476 = vmatpush1.xpose.msra.mxu0 0.0
    %477 = vmatprep.subr.mxu0 0.0
    %478 = vmatpush1.xpose.msra.mxu0 0.0
    %479 = vmatprep.subr.mxu0 0.0
    %480 = vmatpush1.xpose.msra.mxu0 0.0
    %481 = vmatprep.subr.mxu0 0.0
    %482 = vmatpush1.xpose.msra.mxu0 0.0
    %483 = vmatprep.subr.mxu0 0.0
    %484 = vmatpush1.xpose.msra.mxu0 0.0
    %485 = vmatprep.subr.mxu0 0.0
    %486 = vmatpush1.xpose.msra.mxu0 0.0
    %487 = vmatprep.subr.mxu0 0.0
    %488 = vmatpush1.xpose.msra.mxu0 0.0
    %489 = vmatprep.subr.mxu0 0.0
    %490 = vmatpush1.xpose.msra.mxu0 0.0
    %491 = vmatprep.subr.mxu0 0.0
    %492 = vmatpush1.xpose.msra.mxu0 0.0
    %493 = vmatprep.subr.mxu0 0.0
    %494 = vmatpush1.xpose.msra.mxu0 0.0
    %495 = vmatprep.subr.mxu0 0.0
    %496 = vmatpush1.xpose.msra.mxu0 0.0
    %497 = vmatprep.mubr.f32.mxu0 0.0
    %498 = vmatmul.mubr.f32.gmra.mrb[0].mxu0 %v419
    %v499 = vpop.f32.mrb[0].mxu0
    %v500 = vadd.f32 0.0, %v499
    %v501 = vpop.f32.mrb[0].mxu0
    %502 = vdwg.mxu0
    %v505 = vunpack.c.l.s4 1966171168
    %v506 = vunpack.c.0.s8 %v505
    %v507 = vlaneseq
    %v508 = vshrl.u32 %v507, 7
    %v509 = vsub.s32 %v506, %v508
    %v510 = vrot.slane %v500, %v509
    %v511 = vcombine.high %v510, %v510
    %v513 = vunpack.c.l.s4 1966171168
    %v514 = vunpack.c.0.s8 %v513
    %v515 = vlaneseq
    %v516 = vshrl.u32 %v515, 7
    %v517 = vsub.s32 %v514, %v516
    %v518 = vrot.slane %v510, %v517
    %v520 = vunpack.c.l.s4 1966171168
    %v521 = vunpack.c.0.s8 %v520
    %v522 = vlaneseq
    %v523 = vshrl.u32 %v522, 7
    %v524 = vsub.s32 %v521, %v523
    %v525 = vrot.slane %v511, %v524
    %v526 = vlaneseq
    %v527 = vshrl.u32 %v526, 7
    %v528 = vsub.s32 0, %v527
    %v529 = vrot.slane %v518, %v528
    %v530 = vlaneseq
    %v531 = vshrl.u32 %v530, 7
    %v532 = vsub.s32 0, %v531
    %v533 = vrot.slane %v525, %v532
    %v536 = vmul.f32 %v373, %v529
    %v537 = vmul.f32 %v374, %v529
    %v538 = vmul.f32 %v375, %v529
    %v539 = vmul.f32 %v376, %v529
    %v540 = vmul.f32 %v377, %v533
    %v541 = vmul.f32 %v378, %v533
    %v542 = vmul.f32 %v379, %v533
    %v543 = vmul.f32 %v380, %v533
    %v544 = vsel %vm381, %v536, 0.0
    %545 = vadd.xlane.f32.xlu0 %v544
    %v546 = vpop.xlane.xlu0 %545
    %v547 = vsel %vm381, %v537, 0.0
    %548 = vadd.xlane.f32.xlu0 %v547
    %v549 = vpop.xlane.xlu0 %548
    %v550 = vsel %vm381, %v538, 0.0
    %551 = vadd.xlane.f32.xlu0 %v550
    %v552 = vpop.xlane.xlu0 %551
    %v553 = vsel %vm381, %v539, 0.0
    %554 = vadd.xlane.f32.xlu0 %v553
    %v555 = vpop.xlane.xlu0 %554
    %v556 = vsel %vm381, %v540, 0.0
    %557 = vadd.xlane.f32.xlu0 %v556
    %v558 = vpop.xlane.xlu0 %557
    %v559 = vsel %vm381, %v541, 0.0
    %560 = vadd.xlane.f32.xlu0 %v559
    %v561 = vpop.xlane.xlu0 %560
    %v562 = vsel %vm381, %v542, 0.0
    %563 = vadd.xlane.f32.xlu0 %v562
    %v564 = vpop.xlane.xlu0 %563
    %v565 = vsel %vm381, %v543, 0.0
    %566 = vadd.xlane.f32.xlu0 %v565
    %v567 = vpop.xlane.xlu0 %566
    %v568 = vstv %s44
    %v569 = vadd.f32 %v546, %v568
    %v570 = vadd.f32 %v549, %v568
    %v571 = vadd.f32 %v552, %v568
    %v572 = vadd.f32 %v555, %v568
    %v573 = vadd.f32 %v558, %v568
    %v574 = vadd.f32 %v561, %v568
    %v575 = vadd.f32 %v564, %v568
    %v576 = vadd.f32 %v567, %v568
    %v585 = vlaneseq
    %v586 = vand.u32 %v585, 127
    %v587 = vlaneseq
    %v588 = vshrl.u32 %v587, 7
    %v589 = vsub.s32 %v586, %v588
    %v590 = vrot.slane %v569, %v589
    %v591 = vadd.s32 %v586, 4294967288
    %v592 = vlaneseq
    %v593 = vshrl.u32 %v592, 7
    %v594 = vsub.s32 %v591, %v593
    %v595 = vrot.slane %v570, %v594
    %vm596 = vcmask 130112
    %v597 = vsel %vm596, %v595, %v590
    %v598 = vadd.s32 %v586, 4294967280
    %v599 = vlaneseq
    %v600 = vshrl.u32 %v599, 7
    %v601 = vsub.s32 %v598, %v600
    %v602 = vrot.slane %v571, %v601
    %vm603 = vcmask 195712
    %v604 = vsel %vm603, %v602, %v597
    %v605 = vadd.s32 %v586, 4294967272
    %v606 = vlaneseq
    %v607 = vshrl.u32 %v606, 7
    %v608 = vsub.s32 %v605, %v607
    %v609 = vrot.slane %v572, %v608
    %vm610 = vcmask 261312
    %v611 = vsel %vm610, %v609, %v604
    %v612 = vlaneseq
    %v613 = vshrl.u32 %v612, 7
    %v614 = vsub.s32 %v586, %v613
    %v615 = vrot.slane %v573, %v614
    %v616 = vlaneseq
    %v617 = vshrl.u32 %v616, 7
    %v618 = vsub.s32 %v591, %v617
    %v619 = vrot.slane %v574, %v618
    %v620 = vsel %vm596, %v619, %v615
    %v621 = vlaneseq
    %v622 = vshrl.u32 %v621, 7
    %v623 = vsub.s32 %v598, %v622
    %v624 = vrot.slane %v575, %v623
    %v625 = vsel %vm603, %v624, %v620
    %v626 = vlaneseq
    %v627 = vshrl.u32 %v626, 7
    %v628 = vsub.s32 %v605, %v627
    %v629 = vrot.slane %v576, %v628
    %v630 = vsel %vm610, %v629, %v625
    %vm633 = vcmask 253952
    %634 = vst.msk [vmem:[#allocation4] sm:$0x1] %vm633, %v611
    %635 = vst.msk [vmem:[#allocation4 + $0x1] sm:$0x1] %vm633, %v630
    // Predicated region
    $region30: #{dgi_forward.1} parent=1 // pred_check
      _
    $region31: #{dgi_forward.1} parent=1 // pred_check_branch
      %637 = sbr.rel (0) target = $region33
    $region32: #{dgi_forward.1} parent=1 // pred_region
      %s639 = ssub.s32 32, 32
      %640 = vsyncadd [#allocation5], %s639
      %s641 = sshll.u32 [#allocation4], 4
      %s642 = int_to_ptr.vmem [resolvable:$true] %s641
      %647 = dma.vmem_to_hbm [thread:$0]  %s642, 32, %s7, [#allocation5], 16, 16, 1
    $region33: #{dgi_forward.1} parent=1 // pred_fallthru
      _
    // Predicated region
    $region34: #{dgi_forward.1} parent=1 // pred_check
      _
    $region35: #{dgi_forward.1} parent=1 // pred_check_branch
      %649 = sbr.rel (0) target = $region37
    $region36: #{dgi_forward.1} parent=1 // pred_region
      %650 = dma.done [#allocation5], 32
    $region37: #{dgi_forward.1} parent=1 // pred_fallthru
      _
    %651 = vsyncpa [#allocation5], 1

</llo_original>
